<compile_context>
chip_gen: v7x
topology: tpu7x:2x2x1
jax: 0.10.0
libtpu: 0.0.40
codegen_flags: <defaults>
</compile_context>

<pallas_src>
import jax
import jax.numpy as jnp
from jax.experimental import pallas as pl
from jax.experimental.pallas import tpu as pltpu


def _round_up(n: int, m: int) -> int:
    return ((n + m - 1) // m) * m


def _cdiv(a: int, b: int) -> int:
    return -(-a // b)


def _vmem_capacity_bytes() -> int:
    """Per-core VMEM capacity; conservative fallback if the query is unavailable."""
    try:
        return int(pltpu.get_tpu_info().vmem_capacity_bytes)
    except Exception:
        return 64 << 20  # v7x per-TC (smallest of v5e/v6e/v7x)


def _pick_hidden_tile(hid_p, in_dim, out_p, m_itemsize, weight_budget):
    """Largest hidden tile (multiple of 128 dividing hid_p) whose double-buffered
    w1/w2 blocks fit inside weight_budget. Falls back to 128."""
    n128 = hid_p // 128
    best = 128
    for d in range(1, n128 + 1):
        if n128 % d:
            continue
        thid = d * 128
        wbytes = 2 * (in_dim * thid + thid * out_p) * m_itemsize
        if wbytes <= weight_budget:
            best = thid
    return best


def _batch_tiling(B, tb_cap):
    """Pick (TB, B_padded, n_tiles): >=2 tiles when B > 8 (megacore / pipelining),
    TB a multiple of 8 and <= tb_cap, over-pad bounded by < 8 rows per tile."""
    n = max(1, _cdiv(B, tb_cap))
    if B > 8:
        n = max(n, 2)
    TB = _round_up(_cdiv(B, n), 8)
    return TB, n * TB, n


def mlp_kernel(x_ref, w1_ref, b1_ref, w2_ref, b2_ref, o_ref, acc_ref):
    k = pl.program_id(1)

    @pl.when(k == 0)
    def _():
        acc_ref[...] = jnp.zeros_like(acc_ref)

    # fc_1 on the MXU for this hidden-dim slice: cast x to the MXU dtype in-kernel
    # (lands in spare VPU slots under MXU work), f32 accumulation.
    xq = x_ref[...].astype(w1_ref.dtype)
    h = jnp.dot(xq, w1_ref[...], preferred_element_type=jnp.float32)
    # bias + ReLU in f32 (dropout is an eval-mode identity).
    h = jnp.maximum(h + b1_ref[...], 0.0)
    # Partial fc_2 for this hidden slice, accumulated in f32 VMEM scratch.
    acc_ref[...] += jnp.dot(h.astype(w2_ref.dtype), w2_ref[...],
                            preferred_element_type=jnp.float32)

    @pl.when(k == pl.num_programs(1) - 1)
    def _():
        o_ref[...] = (acc_ref[...] + b2_ref[...]).astype(o_ref.dtype)


def prepare_mlp_params(w1, b1, w2, b2, mxu_dtype=jnp.bfloat16):
    """One-time prep: pad hidden/output dims to lane-dense multiples of 128 and cast
    the weights to the MXU dtype (use mxu_dtype=jnp.float32 for full-precision parity).
    Do this once at init and reuse for every forward call."""
    in_dim, hid = w1.shape
    hid2, out_dim = w2.shape
    assert hid == hid2, "w1/w2 hidden dims mismatch"
    f32 = jnp.float32
    hid_p = _round_up(hid, 128)
    out_p = _round_up(out_dim, 128)
    # Zero padding is exact: padded hidden cols get b1=0 -> relu(0)=0 -> multiplied by
    # zero rows of w2; padded output cols are sliced off by the caller.
    w1_p = jnp.zeros((in_dim, hid_p), mxu_dtype).at[:, :hid].set(w1.astype(mxu_dtype))
    b1_p = jnp.zeros((1, hid_p), f32).at[:, :hid].set(b1.reshape(1, -1).astype(f32))
    w2_p = jnp.zeros((hid_p, out_p), mxu_dtype).at[:hid, :out_dim].set(w2.astype(mxu_dtype))
    b2_p = jnp.zeros((1, out_p), f32).at[:, :out_dim].set(b2.reshape(1, -1).astype(f32))
    return dict(w1=w1_p, b1=b1_p, w2=w2_p, b2=b2_p,
                in_dim=in_dim, hidden_dim=hid, output_dim=out_dim)


def mlp_forward(x, params):
    """x: (B, in_dim) float; params from prepare_mlp_params. Returns (B, out_dim) f32."""
    w1_p, b1_p, w2_p, b2_p = params["w1"], params["b1"], params["w2"], params["b2"]
    in_dim, out_dim = params["in_dim"], params["output_dim"]
    hid_p, out_p = w1_p.shape[1], w2_p.shape[1]
    B = x.shape[0]
    assert x.shape[1] == in_dim

    m_item = jnp.dtype(w1_p.dtype).itemsize
    x_item = jnp.dtype(x.dtype).itemsize

    # Per-chip VMEM budget (75% of capacity, never above 100 MiB).
    budget = min(int(0.75 * _vmem_capacity_bytes()), 100 << 20)

    # Hidden-dim tile: keep weights as resident as the budget allows; tile otherwise.
    THID = _pick_hidden_tile(hid_p, in_dim, out_p, m_item, int(0.6 * budget))
    n_k = hid_p // THID

    # Batch tile cap from the VMEM left over after (double-buffered) weight blocks.
    w_block_bytes = 2 * (in_dim * THID + THID * out_p) * m_item + 2 * (THID + out_p) * 4
    row_bytes = 2 * in_dim * x_item + 3 * out_p * 4 + THID * (4 + m_item)
    tb_cap = (budget - w_block_bytes) // row_bytes
    tb_cap = max(8, min(1024, (tb_cap // 8) * 8))
    TB, B_p, n_b = _batch_tiling(B, tb_cap)

    # Only copy x when the batch needs rounding up to a multiple of the tile.
    x_in = x
    if B_p != B:
        x_in = jnp.zeros((B_p, in_dim), x.dtype).at[:B].set(x)

    cost = pl.CostEstimate(
        flops=2 * B_p * (in_dim * hid_p + hid_p * out_p),
        transcendentals=0,
        bytes_accessed=(B_p * in_dim * x_item
                        + (w1_p.size + w2_p.size) * m_item * (n_b if n_k > 1 else 1)
                        + (b1_p.size + b2_p.size) * 4
                        + B_p * out_p * 4),
    )

    def build(single_buffer_consts):
        def spec(shape, index_map, *, const=False):
            if const and single_buffer_consts:
                # Constant block index -> one buffer is enough; saves VMEM.
                return pl.BlockSpec(shape, index_map, pipeline_mode=pl.Buffered(1))
            return pl.BlockSpec(shape, index_map)

        in_specs = [
            spec((TB, in_dim), lambda i, k: (i, 0)),                        # x streams per batch tile
            spec((in_dim, THID), lambda i, k: (0, k), const=(n_k == 1)),    # w1
            spec((1, THID),      lambda i, k: (0, k), const=(n_k == 1)),    # b1
            spec((THID, out_p),  lambda i, k: (k, 0), const=(n_k == 1)),    # w2
            spec((1, out_p),     lambda i, k: (0, 0), const=True),          # b2
        ]
        return pl.pallas_call(
            mlp_kernel,
            out_shape=jax.ShapeDtypeStruct((B_p, out_p), jnp.float32),
            grid_spec=pltpu.PrefetchScalarGridSpec(
                num_scalar_prefetch=0,
                grid=(n_b, n_k),
                in_specs=in_specs,
                out_specs=pl.BlockSpec((TB, out_p), lambda i, k: (i, 0)),
                scratch_shapes=[pltpu.VMEM((TB, out_p), jnp.float32)],
            ),
            compiler_params=pltpu.CompilerParams(
                dimension_semantics=("parallel", "arbitrary"),
                vmem_limit_bytes=int(budget),
            ),
            cost_estimate=cost,
        )

    try:
        out_padded = build(True)(x_in, w1_p, b1_p, w2_p, b2_p)
    except Exception:
        # pl.Buffered(1) not accepted on this jax version -> default double buffering.
        out_padded = build(False)(x_in, w1_p, b1_p, w2_p, b2_p)

    return out_padded[:B, :out_dim]


def init_linear_params(key, in_features, out_features, dtype=jnp.float32):
    """Deterministic init mimicking nn.Linear default: U(-1/sqrt(in), 1/sqrt(in)).
    Weight returned already transposed to (in_features, out_features)."""
    kw, kb = jax.random.split(key)
    bound = 1.0 / (in_features ** 0.5)
    w = jax.random.uniform(kw, (in_features, out_features), dtype,
                           minval=-bound, maxval=bound)
    b = jax.random.uniform(kb, (1, out_features), dtype,
                           minval=-bound, maxval=bound)
    return w, b


if __name__ == "__main__":
    batch = 8
    input_dim = 16
    hidden_dim = 32
    output_dim = 8

    key = jax.random.PRNGKey(0)
    kx, k1, k2 = jax.random.split(key, 3)

    x = jax.random.normal(kx, (batch, input_dim), dtype=jnp.float32)
    w1, b1 = init_linear_params(k1, input_dim, hidden_dim)
    w2, b2 = init_linear_params(k2, hidden_dim, output_dim)

    # One-time weight prep (pad + bf16 cast), reused across every forward call.
    params = prepare_mlp_params(w1, b1, w2, b2)

    out = mlp_forward(x, params)
    jax.block_until_ready(out)

    # Reference (same math as PyTorch forward in eval mode), full f32.
    ref_f32 = jnp.maximum(x @ w1 + b1, 0.0) @ w2 + b2
    assert out.shape == (batch, output_dim)
    # bf16 MXU operands with f32 accumulation -> loosened tolerance.
    assert jnp.allclose(out, ref_f32, atol=5e-2, rtol=5e-2), (
        float(jnp.max(jnp.abs(out - ref_f32))))

    print("KERNEL_OK")
</pallas_src>

<mosaic_0001>
module attributes {stable_mosaic.version = 11 : i64} {
  func.func @mlp_kernel(%arg0: i32, %arg1: i32, %arg2: memref<8x16xf32, #tpu.memory_space<vmem>>, %arg3: memref<16x128xbf16, #tpu.memory_space<vmem>>, %arg4: memref<1x128xf32, #tpu.memory_space<vmem>>, %arg5: memref<128x128xbf16, #tpu.memory_space<vmem>>, %arg6: memref<1x128xf32, #tpu.memory_space<vmem>>, %arg7: memref<8x128xf32, #tpu.memory_space<vmem>>, %arg8: memref<8x128xf32, #tpu.memory_space<vmem>>) attributes {dimension_semantics = [#tpu.dimension_semantics<parallel>, #tpu.dimension_semantics<arbitrary>], iteration_bounds = array<i64: 1, 1>, scalar_prefetch = 0 : i64, scratch_operands = 1 : i64, tpu.core_type = #tpu.core_type<tc>, window_params = [{transform_indices = @transform_0, window_bounds = array<i64: 8, 16>}, {pipeline_mode = #tpu.pipeline_mode<synchronous>, transform_indices = @transform_1, window_bounds = array<i64: 16, 128>}, {pipeline_mode = #tpu.pipeline_mode<synchronous>, transform_indices = @transform_2, window_bounds = array<i64: 1, 128>}, {pipeline_mode = #tpu.pipeline_mode<synchronous>, transform_indices = @transform_3, window_bounds = array<i64: 128, 128>}, {pipeline_mode = #tpu.pipeline_mode<synchronous>, transform_indices = @transform_4, window_bounds = array<i64: 1, 128>}, {transform_indices = @transform_5, window_bounds = array<i64: 8, 128>}]} {
    %c0_i32 = arith.constant 0 : i32
    %0 = arith.cmpi eq, %arg1, %c0_i32 : i32
    %1 = arith.extui %0 : i1 to i32
    %c0_i32_0 = arith.constant 0 : i32
    %2 = arith.cmpi ne, %1, %c0_i32_0 : i32
    scf.if %2 {
      %cst_16 = arith.constant 0.000000e+00 : f32
      %21 = vector.broadcast %cst_16 : f32 to vector<8x128xf32>
      %c0_17 = arith.constant 0 : index
      %c0_18 = arith.constant 0 : index
      %22 = vector.load %arg8[%c0_17, %c0_18] : memref<8x128xf32, #tpu.memory_space<vmem>>, vector<8x128xf32>
      tpu.vector_store %arg8[%c0_17, %c0_18], %21 {strides = array<i32>} : memref<8x128xf32, #tpu.memory_space<vmem>>, vector<8x128xf32>,
    } else {
    }
    %c0 = arith.constant 0 : index
    %c0_1 = arith.constant 0 : index
    %3 = vector.load %arg2[%c0, %c0_1] : memref<8x16xf32, #tpu.memory_space<vmem>>, vector<8x16xf32>
    %4 = arith.truncf %3 : vector<8x16xf32> to vector<8x16xbf16>
    %c0_2 = arith.constant 0 : index
    %c0_3 = arith.constant 0 : index
    %5 = vector.load %arg3[%c0_2, %c0_3] : memref<16x128xbf16, #tpu.memory_space<vmem>>, vector<16x128xbf16>
    %cst = arith.constant dense<0.000000e+00> : vector<8x128xf32>
    %6 = tpu.matmul %4, %5, %cst {dimension_numbers = #tpu.dot_dimension_numbers<[1], [0], [0], [1], [0, 0, 1, 1], [], []>} : vector<8x16xbf16>, vector<16x128xbf16>, vector<8x128xf32> -> vector<8x128xf32>
    %c0_4 = arith.constant 0 : index
    %c0_5 = arith.constant 0 : index
    %7 = vector.load %arg4[%c0_4, %c0_5] : memref<1x128xf32, #tpu.memory_space<vmem>>, vector<1x128xf32>
    %8 = vector.broadcast %7 : vector<1x128xf32> to vector<8x128xf32>
    %9 = arith.addf %6, %8 : vector<8x128xf32>
    %cst_6 = arith.constant 0.000000e+00 : f32
    %10 = vector.broadcast %cst_6 : f32 to vector<8x128xf32>
    %11 = arith.maximumf %9, %10 : vector<8x128xf32>
    %c0_7 = arith.constant 0 : index
    %c0_8 = arith.constant 0 : index
    %12 = vector.load %arg8[%c0_7, %c0_8] : memref<8x128xf32, #tpu.memory_space<vmem>>, vector<8x128xf32>
    %13 = arith.truncf %11 : vector<8x128xf32> to vector<8x128xbf16>
    %c0_9 = arith.constant 0 : index
    %c0_10 = arith.constant 0 : index
    %14 = vector.load %arg5[%c0_9, %c0_10] : memref<128x128xbf16, #tpu.memory_space<vmem>>, vector<128x128xbf16>
    %cst_11 = arith.constant dense<0.000000e+00> : vector<8x128xf32>
    %15 = tpu.matmul %13, %14, %cst_11 {dimension_numbers = #tpu.dot_dimension_numbers<[1], [0], [0], [1], [0, 0, 1, 1], [], []>} : vector<8x128xbf16>, vector<128x128xbf16>, vector<8x128xf32> -> vector<8x128xf32>
    %16 = arith.addf %12, %15 : vector<8x128xf32>
    %c0_12 = arith.constant 0 : index
    %c0_13 = arith.constant 0 : index
    %17 = vector.load %arg8[%c0_12, %c0_13] : memref<8x128xf32, #tpu.memory_space<vmem>>, vector<8x128xf32>
    tpu.vector_store %arg8[%c0_12, %c0_13], %16 {strides = array<i32>} : memref<8x128xf32, #tpu.memory_space<vmem>>, vector<8x128xf32>,
    %c0_i32_14 = arith.constant 0 : i32
    %18 = arith.cmpi eq, %arg1, %c0_i32_14 : i32
    %19 = arith.extui %18 : i1 to i32
    %c0_i32_15 = arith.constant 0 : i32
    %20 = arith.cmpi ne, %19, %c0_i32_15 : i32
    scf.if %20 {
      %c0_16 = arith.constant 0 : index
      %c0_17 = arith.constant 0 : index
      %21 = vector.load %arg8[%c0_16, %c0_17] : memref<8x128xf32, #tpu.memory_space<vmem>>, vector<8x128xf32>
      %c0_18 = arith.constant 0 : index
      %c0_19 = arith.constant 0 : index
      %22 = vector.load %arg6[%c0_18, %c0_19] : memref<1x128xf32, #tpu.memory_space<vmem>>, vector<1x128xf32>
      %23 = vector.broadcast %22 : vector<1x128xf32> to vector<8x128xf32>
      %24 = arith.addf %21, %23 : vector<8x128xf32>
      %c0_20 = arith.constant 0 : index
      %c0_21 = arith.constant 0 : index
      %25 = vector.load %arg7[%c0_20, %c0_21] : memref<8x128xf32, #tpu.memory_space<vmem>>, vector<8x128xf32>
      tpu.vector_store %arg7[%c0_20, %c0_21], %24 {strides = array<i32>} : memref<8x128xf32, #tpu.memory_space<vmem>>, vector<8x128xf32>,
    } else {
    }
    return
  }
  func.func @transform_0(%arg0: i32, %arg1: i32) -> (i32, i32) {
    %c0_i32 = arith.constant 0 : i32
    %c0_i32_0 = arith.constant 0 : i32
    return %arg0, %c0_i32 : i32, i32
  }
  func.func @transform_1(%arg0: i32, %arg1: i32) -> (i32, i32) {
    %c0_i32 = arith.constant 0 : i32
    %c0_i32_0 = arith.constant 0 : i32
    return %c0_i32, %arg1 : i32, i32
  }
  func.func @transform_2(%arg0: i32, %arg1: i32) -> (i32, i32) {
    %c0_i32 = arith.constant 0 : i32
    %c0_i32_0 = arith.constant 0 : i32
    return %c0_i32, %arg1 : i32, i32
  }
  func.func @transform_3(%arg0: i32, %arg1: i32) -> (i32, i32) {
    %c0_i32 = arith.constant 0 : i32
    %c0_i32_0 = arith.constant 0 : i32
    return %arg1, %c0_i32 : i32, i32
  }
  func.func @transform_4(%arg0: i32, %arg1: i32) -> (i32, i32) {
    %c0_i32 = arith.constant 0 : i32
    %c0_i32_0 = arith.constant 0 : i32
    %c0_i32_1 = arith.constant 0 : i32
    return %c0_i32, %c0_i32_0 : i32, i32
  }
  func.func @transform_5(%arg0: i32, %arg1: i32) -> (i32, i32) {
    %c0_i32 = arith.constant 0 : i32
    %c0_i32_0 = arith.constant 0 : i32
    return %arg0, %c0_i32 : i32, i32
  }
}

module attributes {stable_mosaic.version = 11 : i64} {
  func.func @mlp_kernel(%arg0: i32, %arg1: i32, %arg2: memref<8x16xf32, #tpu.memory_space<vmem>>, %arg3: memref<16x128xbf16, #tpu.memory_space<vmem>>, %arg4: memref<1x128xf32, #tpu.memory_space<vmem>>, %arg5: memref<128x128xbf16, #tpu.memory_space<vmem>>, %arg6: memref<1x128xf32, #tpu.memory_space<vmem>>, %arg7: memref<8x128xf32, #tpu.memory_space<vmem>>, %arg8: memref<8x128xf32, #tpu.memory_space<vmem>>) attributes {dimension_semantics = [#tpu.dimension_semantics<parallel>, #tpu.dimension_semantics<arbitrary>], iteration_bounds = array<i64: 1, 1>, scalar_prefetch = 0 : i64, scratch_operands = 1 : i64, tpu.core_type = #tpu.core_type<tc>, window_params = [{transform_indices = @transform_0, window_bounds = array<i64: 8, 16>}, {transform_indices = @transform_1, window_bounds = array<i64: 16, 128>}, {transform_indices = @transform_2, window_bounds = array<i64: 1, 128>}, {transform_indices = @transform_3, window_bounds = array<i64: 128, 128>}, {pipeline_mode = #tpu.pipeline_mode<synchronous>, transform_indices = @transform_4, window_bounds = array<i64: 1, 128>}, {transform_indices = @transform_5, window_bounds = array<i64: 8, 128>}]} {
    %c0_i32 = arith.constant 0 : i32
    %0 = arith.cmpi eq, %arg1, %c0_i32 : i32
    %1 = arith.extui %0 : i1 to i32
    %c0_i32_0 = arith.constant 0 : i32
    %2 = arith.cmpi ne, %1, %c0_i32_0 : i32
    scf.if %2 {
      %cst_16 = arith.constant 0.000000e+00 : f32
      %21 = vector.broadcast %cst_16 : f32 to vector<8x128xf32>
      %c0_17 = arith.constant 0 : index
      %c0_18 = arith.constant 0 : index
      %22 = vector.load %arg8[%c0_17, %c0_18] : memref<8x128xf32, #tpu.memory_space<vmem>>, vector<8x128xf32>
      tpu.vector_store %arg8[%c0_17, %c0_18], %21 {strides = array<i32>} : memref<8x128xf32, #tpu.memory_space<vmem>>, vector<8x128xf32>,
    } else {
    }
    %c0 = arith.constant 0 : index
    %c0_1 = arith.constant 0 : index
    %3 = vector.load %arg2[%c0, %c0_1] : memref<8x16xf32, #tpu.memory_space<vmem>>, vector<8x16xf32>
    %4 = arith.truncf %3 : vector<8x16xf32> to vector<8x16xbf16>
    %c0_2 = arith.constant 0 : index
    %c0_3 = arith.constant 0 : index
    %5 = vector.load %arg3[%c0_2, %c0_3] : memref<16x128xbf16, #tpu.memory_space<vmem>>, vector<16x128xbf16>
    %cst = arith.constant dense<0.000000e+00> : vector<8x128xf32>
    %6 = tpu.matmul %4, %5, %cst {dimension_numbers = #tpu.dot_dimension_numbers<[1], [0], [0], [1], [0, 0, 1, 1], [], []>} : vector<8x16xbf16>, vector<16x128xbf16>, vector<8x128xf32> -> vector<8x128xf32>
    %c0_4 = arith.constant 0 : index
    %c0_5 = arith.constant 0 : index
    %7 = vector.load %arg4[%c0_4, %c0_5] : memref<1x128xf32, #tpu.memory_space<vmem>>, vector<1x128xf32>
    %8 = vector.broadcast %7 : vector<1x128xf32> to vector<8x128xf32>
    %9 = arith.addf %6, %8 : vector<8x128xf32>
    %cst_6 = arith.constant 0.000000e+00 : f32
    %10 = vector.broadcast %cst_6 : f32 to vector<8x128xf32>
    %11 = arith.maximumf %9, %10 : vector<8x128xf32>
    %c0_7 = arith.constant 0 : index
    %c0_8 = arith.constant 0 : index
    %12 = vector.load %arg8[%c0_7, %c0_8] : memref<8x128xf32, #tpu.memory_space<vmem>>, vector<8x128xf32>
    %13 = arith.truncf %11 : vector<8x128xf32> to vector<8x128xbf16>
    %c0_9 = arith.constant 0 : index
    %c0_10 = arith.constant 0 : index
    %14 = vector.load %arg5[%c0_9, %c0_10] : memref<128x128xbf16, #tpu.memory_space<vmem>>, vector<128x128xbf16>
    %cst_11 = arith.constant dense<0.000000e+00> : vector<8x128xf32>
    %15 = tpu.matmul %13, %14, %cst_11 {dimension_numbers = #tpu.dot_dimension_numbers<[1], [0], [0], [1], [0, 0, 1, 1], [], []>} : vector<8x128xbf16>, vector<128x128xbf16>, vector<8x128xf32> -> vector<8x128xf32>
    %16 = arith.addf %12, %15 : vector<8x128xf32>
    %c0_12 = arith.constant 0 : index
    %c0_13 = arith.constant 0 : index
    %17 = vector.load %arg8[%c0_12, %c0_13] : memref<8x128xf32, #tpu.memory_space<vmem>>, vector<8x128xf32>
    tpu.vector_store %arg8[%c0_12, %c0_13], %16 {strides = array<i32>} : memref<8x128xf32, #tpu.memory_space<vmem>>, vector<8x128xf32>,
    %c0_i32_14 = arith.constant 0 : i32
    %18 = arith.cmpi eq, %arg1, %c0_i32_14 : i32
    %19 = arith.extui %18 : i1 to i32
    %c0_i32_15 = arith.constant 0 : i32
    %20 = arith.cmpi ne, %19, %c0_i32_15 : i32
    scf.if %20 {
      %c0_16 = arith.constant 0 : index
      %c0_17 = arith.constant 0 : index
      %21 = vector.load %arg8[%c0_16, %c0_17] : memref<8x128xf32, #tpu.memory_space<vmem>>, vector<8x128xf32>
      %c0_18 = arith.constant 0 : index
      %c0_19 = arith.constant 0 : index
      %22 = vector.load %arg6[%c0_18, %c0_19] : memref<1x128xf32, #tpu.memory_space<vmem>>, vector<1x128xf32>
      %23 = vector.broadcast %22 : vector<1x128xf32> to vector<8x128xf32>
      %24 = arith.addf %21, %23 : vector<8x128xf32>
      %c0_20 = arith.constant 0 : index
      %c0_21 = arith.constant 0 : index
      %25 = vector.load %arg7[%c0_20, %c0_21] : memref<8x128xf32, #tpu.memory_space<vmem>>, vector<8x128xf32>
      tpu.vector_store %arg7[%c0_20, %c0_21], %24 {strides = array<i32>} : memref<8x128xf32, #tpu.memory_space<vmem>>, vector<8x128xf32>,
    } else {
    }
    return
  }
  func.func @transform_0(%arg0: i32, %arg1: i32) -> (i32, i32) {
    %c0_i32 = arith.constant 0 : i32
    %c0_i32_0 = arith.constant 0 : i32
    return %arg0, %c0_i32 : i32, i32
  }
  func.func @transform_1(%arg0: i32, %arg1: i32) -> (i32, i32) {
    %c0_i32 = arith.constant 0 : i32
    %c0_i32_0 = arith.constant 0 : i32
    return %c0_i32, %arg1 : i32, i32
  }
  func.func @transform_2(%arg0: i32, %arg1: i32) -> (i32, i32) {
    %c0_i32 = arith.constant 0 : i32
    %c0_i32_0 = arith.constant 0 : i32
    return %c0_i32, %arg1 : i32, i32
  }
  func.func @transform_3(%arg0: i32, %arg1: i32) -> (i32, i32) {
    %c0_i32 = arith.constant 0 : i32
    %c0_i32_0 = arith.constant 0 : i32
    return %arg1, %c0_i32 : i32, i32
  }
  func.func @transform_4(%arg0: i32, %arg1: i32) -> (i32, i32) {
    %c0_i32 = arith.constant 0 : i32
    %c0_i32_0 = arith.constant 0 : i32
    %c0_i32_1 = arith.constant 0 : i32
    return %c0_i32, %c0_i32_0 : i32, i32
  }
  func.func @transform_5(%arg0: i32, %arg1: i32) -> (i32, i32) {
    %c0_i32 = arith.constant 0 : i32
    %c0_i32_0 = arith.constant 0 : i32
    return %arg0, %c0_i32 : i32, i32
  }
}

</mosaic_0001>

<llo_original>
// kernel: tpu_custom_call.1
$region0: #{tpu_custom_call.1}
  #allocation0 [shape = 'u32[]', space=smem, size = 0x4, offset = 0x4, fixed_abs, tag = 'smem constant byte address 0x4 - core index']
  #allocation1 [shape = 'u32[144,128]{1,0:T(1,128)}', space=vmem, size = 0x12000, scoped, tag = 'internal scratch']
  #allocation2 [shape = 'f32[8,128]{1,0:T(8,128)}', space=vmem, size = 0x1000, scoped, tag = 'scratch operand']
  %s0 = inlined_call_operand.hbm [shape: f32[8,16], index: 0, kind: input, shape index: {}]
  %s1 = inlined_call_operand.hbm [shape: bf16[16,128], index: 1, kind: input, shape index: {}]
  %s2 = inlined_call_operand.vmem [shape: f32[1,128], index: 2, kind: input, shape index: {}]
  %s3 = inlined_call_operand.hbm [shape: bf16[128,128], index: 3, kind: input, shape index: {}]
  %s4 = inlined_call_operand.vmem [shape: f32[1,128], index: 4, kind: input, shape index: {}]
  %s5 = inlined_call_operand.hbm [shape: f32[8,128], index: 5, kind: output, shape index: {}]
  %s6 = sld [smem:[#allocation0]]
  $region50: #{tpu_custom_call.1} parent=0
    _
  %s8 = ssub.s32 1, %s6
  %s9 = scalar_select 0, %s8, %s6
  $region1: #{tpu_custom_call.1} parent=0
    #allocation3 [shape = 'u8[4096]{0}', space=vmem, size = 0x1000, scoped, tag = 'input window, operand 0, single buffered']
    #allocation4 [shape = 's32[1]{0}', space=sflag, size = 0x4, scoped, tag = 'scoped memory for tpu_custom_call.1']
    #allocation5 [shape = 's32[1]{0}', space=sflag, size = 0x4, scoped, tag = 'scoped memory for tpu_custom_call.1']
    #allocation6 [shape = 'u8[4096]{0}', space=vmem, size = 0x1000, scoped, tag = 'input window, operand 1, single buffered']
    #allocation7 [shape = 's32[1]{0}', space=sflag, size = 0x4, scoped, tag = 'scoped memory for tpu_custom_call.1']
    #allocation8 [shape = 'u8[32768]{0}', space=vmem, size = 0x8000, scoped, tag = 'input window, operand 3, single buffered']
    #allocation9 [shape = 'u8[4096]{0}', space=vmem, size = 0x1000, scoped, tag = 'output window, operand 0, single buffered']
    %10 = vsyncpa [#allocation4], 0
    %11 = vsyncpa [#allocation7], 0
    %12 = vsyncpa [#allocation5], 0
    // Predicated region
    $region2: #{tpu_custom_call.1} parent=1 // pred_check
      _
    $region3: #{tpu_custom_call.1} parent=1 // pred_check_branch
      %14 = sbr.rel (0) target = $region5
    $region4: #{tpu_custom_call.1} parent=1 // pred_region
      %s16 = ssub.s32 128, 128
      %17 = vsyncadd [#allocation4], %s16
      %s19 = sshll.u32 [#allocation3], 4
      %s20 = int_to_ptr.vmem [resolvable:$true] %s19
      %22 = dma.hbm_to_vmem [thread:$0]  %s0, 128, %s20, [#allocation4]
    $region5: #{tpu_custom_call.1} parent=1 // pred_fallthru
      _
    // Predicated region
    $region6: #{tpu_custom_call.1} parent=1 // pred_check
      _
    $region7: #{tpu_custom_call.1} parent=1 // pred_check_branch
      %24 = sbr.rel (0) target = $region9
    $region8: #{tpu_custom_call.1} parent=1 // pred_region
      %s26 = ssub.s32 128, 128
      %27 = vsyncadd [#allocation7], %s26
      %s28 = sshll.u32 [#allocation6], 4
      %s29 = int_to_ptr.vmem [resolvable:$true] %s28
      %34 = dma.hbm_to_vmem [thread:$0]  %s1, 128, %s29, [#allocation7], 64, 64, 4
    $region9: #{tpu_custom_call.1} parent=1 // pred_fallthru
      _
    // Predicated region
    $region10: #{tpu_custom_call.1} parent=1 // pred_check
      _
    $region11: #{tpu_custom_call.1} parent=1 // pred_check_branch
      %36 = sbr.rel (0) target = $region13
    $region12: #{tpu_custom_call.1} parent=1 // pred_region
      _
    $region13: #{tpu_custom_call.1} parent=1 // pred_fallthru
      _
    // Predicated region
    $region14: #{tpu_custom_call.1} parent=1 // pred_check
      _
    $region15: #{tpu_custom_call.1} parent=1 // pred_check_branch
      %38 = sbr.rel (0) target = $region17
    $region16: #{tpu_custom_call.1} parent=1 // pred_region
      %s40 = ssub.s32 1024, 1024
      %41 = vsyncadd [#allocation7], %s40
      %s42 = sshll.u32 [#allocation8], 4
      %s43 = int_to_ptr.vmem [resolvable:$true] %s42
      %48 = dma.hbm_to_vmem [thread:$0]  %s3, 1024, %s43, [#allocation7], 64, 64, 4
    $region17: #{tpu_custom_call.1} parent=1 // pred_fallthru
      _
    // Predicated region
    $region18: #{tpu_custom_call.1} parent=1 // pred_check
      _
    $region19: #{tpu_custom_call.1} parent=1 // pred_check_branch
      %50 = sbr.rel (0) target = $region21
    $region20: #{tpu_custom_call.1} parent=1 // pred_region
      _
    $region21: #{tpu_custom_call.1} parent=1 // pred_fallthru
      _
    // Predicated region
    $region22: #{tpu_custom_call.1} parent=1 // pred_check
      _
    $region23: #{tpu_custom_call.1} parent=1 // pred_check_branch
      %52 = sbr.rel (0) target = $region25
    $region24: #{tpu_custom_call.1} parent=1 // pred_region
      %53 = dma.done [#allocation4], 128
    $region25: #{tpu_custom_call.1} parent=1 // pred_fallthru
      _
    // Predicated region
    $region26: #{tpu_custom_call.1} parent=1 // pred_check
      _
    $region27: #{tpu_custom_call.1} parent=1 // pred_check_branch
      %55 = sbr.rel (0) target = $region29
    $region28: #{tpu_custom_call.1} parent=1 // pred_region
      %56 = dma.done [#allocation7], 128
    $region29: #{tpu_custom_call.1} parent=1 // pred_fallthru
      _
    // Predicated region
    $region30: #{tpu_custom_call.1} parent=1 // pred_check
      _
    $region31: #{tpu_custom_call.1} parent=1 // pred_check_branch
      %58 = sbr.rel (0) target = $region33
    $region32: #{tpu_custom_call.1} parent=1 // pred_region
      %59 = dma.done [#allocation7], 1024
    $region33: #{tpu_custom_call.1} parent=1 // pred_fallthru
      _
    %p61 = scmp.eq.s32.totalorder 0, 0
    // Predicated region
    $region34: #{tpu_custom_call.1} parent=1 // pred_check
      %p62 = pneg %p61
    $region35: #{tpu_custom_call.1} parent=1 // pred_check_branch
      %64 = sbr.rel (%p62) target = $region37
    $region36: #{tpu_custom_call.1} parent=1 // pred_region
      %65 = vst [vmem:[#allocation2] sm:$0xff] 0.0
    $region37: #{tpu_custom_call.1} parent=1 // pred_fallthru
      _
    %v66 = vld [vmem:[#allocation3] sm:$0xff]
    %v67 = vpack.c.bf16 %v66, %v66
    %v68 = vld [vmem:[#allocation6] sm:$0xf]
    %v69 = vld [vmem:[#allocation6 + $0x4] sm:$0xf]
    %v70 = vld [vmem:[%s2] sm:$0x1]
    %v72 = vlaneseq
    %v73 = vshrl.u32 %v72, 7
    %v74 = vsub.s32 0, %v73
    %v75 = vrot.slane %v70, %v74
    %v79 = vunpack.c.l.b16 %v68
    %v80 = vunpack.c.l.b16 %v69
    %v81 = vpack.c.b16 %v80, %v79
    %vm83 = vcmask 130048
    %v85 = vsel %vm83, %v67, 0
    %87 = vmatprep.subr.bf16.mxu0 0
    %88 = vmatpush1.bf16.msra.mxu0 %v81
    %89 = vmatprep.subr.bf16.mxu0 0
    %90 = vmatpush1.bf16.msra.mxu0 0
    %91 = vmatprep.subr.bf16.mxu0 0
    %92 = vmatpush1.bf16.msra.mxu0 0
    %93 = vmatprep.subr.bf16.mxu0 0
    %94 = vmatpush1.bf16.msra.mxu0 0
    %95 = vmatprep.subr.bf16.mxu0 0
    %96 = vmatpush1.bf16.msra.mxu0 0
    %97 = vmatprep.subr.bf16.mxu0 0
    %98 = vmatpush1.bf16.msra.mxu0 0
    %99 = vmatprep.subr.bf16.mxu0 0
    %100 = vmatpush1.bf16.msra.mxu0 0
    %101 = vmatprep.subr.bf16.mxu0 0
    %102 = vmatpush1.bf16.msra.mxu0 0
    %103 = vmatprep.subr.bf16.mxu0 0
    %104 = vmatpush1.bf16.msra.mxu0 0
    %105 = vmatprep.subr.bf16.mxu0 0
    %106 = vmatpush1.bf16.msra.mxu0 0
    %107 = vmatprep.subr.bf16.mxu0 0
    %108 = vmatpush1.bf16.msra.mxu0 0
    %109 = vmatprep.subr.bf16.mxu0 0
    %110 = vmatpush1.bf16.msra.mxu0 0
    %111 = vmatprep.subr.bf16.mxu0 0
    %112 = vmatpush1.bf16.msra.mxu0 0
    %113 = vmatprep.subr.bf16.mxu0 0
    %114 = vmatpush1.bf16.msra.mxu0 0
    %115 = vmatprep.subr.bf16.mxu0 0
    %116 = vmatpush1.bf16.msra.mxu0 0
    %117 = vmatprep.subr.bf16.mxu0 0
    %118 = vmatpush1.bf16.msra.mxu0 0
    %119 = vmatprep.mubr.bf16.mxu0 0
    %120 = vmatmul.mubr.bf16.gmra.mrb[0].mxu0 %v85
    %v121 = vpop.f32.mrb[0].mxu0
    %v122 = vadd.f32 %v75, %v121
    %v123 = vpop.f32.mrb[0].mxu0
    %v124 = vpop.f32.mrb[0].mxu0
    %v125 = vpop.f32.mrb[0].mxu0
    %126 = vdwg.mxu0
    %v127 = vmax.f32 %v122, 0.0
    %v128 = vld [vmem:[#allocation2] sm:$0xff]
    %v129 = vpack.c.bf16 %v127, %v127
    %v130 = vld [vmem:[#allocation8] sm:$0xf]
    %v131 = vld [vmem:[#allocation8 + $0x4] sm:$0xf]
    %v132 = vld [vmem:[#allocation8 + $0x8] sm:$0xf]
    %v133 = vld [vmem:[#allocation8 + $0xc] sm:$0xf]
    %v134 = vld [vmem:[#allocation8 + $0x10] sm:$0xf]
    %v135 = vld [vmem:[#allocation8 + $0x14] sm:$0xf]
    %v136 = vld [vmem:[#allocation8 + $0x18] sm:$0xf]
    %v137 = vld [vmem:[#allocation8 + $0x1c] sm:$0xf]
    %v138 = vld [vmem:[#allocation8 + $0x20] sm:$0xf]
    %v139 = vld [vmem:[#allocation8 + $0x24] sm:$0xf]
    %v140 = vld [vmem:[#allocation8 + $0x28] sm:$0xf]
    %v141 = vld [vmem:[#allocation8 + $0x2c] sm:$0xf]
    %v142 = vld [vmem:[#allocation8 + $0x30] sm:$0xf]
    %v143 = vld [vmem:[#allocation8 + $0x34] sm:$0xf]
    %v144 = vld [vmem:[#allocation8 + $0x38] sm:$0xf]
    %v145 = vld [vmem:[#allocation8 + $0x3c] sm:$0xf]
    %v162 = vunpack.c.l.b16 %v130
    %v163 = vunpack.c.l.b16 %v131
    %v164 = vunpack.c.l.b16 %v132
    %v165 = vunpack.c.l.b16 %v133
    %v166 = vunpack.c.l.b16 %v134
    %v167 = vunpack.c.l.b16 %v135
    %v168 = vunpack.c.l.b16 %v136
    %v169 = vunpack.c.l.b16 %v137
    %v170 = vunpack.c.l.b16 %v138
    %v171 = vunpack.c.l.b16 %v139
    %v172 = vunpack.c.l.b16 %v140
    %v173 = vunpack.c.l.b16 %v141
    %v174 = vunpack.c.l.b16 %v142
    %v175 = vunpack.c.l.b16 %v143
    %v176 = vunpack.c.l.b16 %v144
    %v177 = vunpack.c.l.b16 %v145
    %v178 = vpack.c.b16 %v163, %v162
    %v179 = vpack.c.b16 %v165, %v164
    %v180 = vpack.c.b16 %v167, %v166
    %v181 = vpack.c.b16 %v169, %v168
    %v182 = vpack.c.b16 %v171, %v170
    %v183 = vpack.c.b16 %v173, %v172
    %v184 = vpack.c.b16 %v175, %v174
    %v185 = vpack.c.b16 %v177, %v176
    %194 = vmatprep.subr.bf16.mxu0 0
    %195 = vmatpush1.bf16.msra.mxu0 %v178
    %196 = vmatprep.subr.bf16.mxu0 0
    %197 = vmatpush1.bf16.msra.mxu0 %v179
    %198 = vmatprep.subr.bf16.mxu0 0
    %199 = vmatpush1.bf16.msra.mxu0 %v180
    %200 = vmatprep.subr.bf16.mxu0 0
    %201 = vmatpush1.bf16.msra.mxu0 %v181
    %202 = vmatprep.subr.bf16.mxu0 0
    %203 = vmatpush1.bf16.msra.mxu0 %v182
    %204 = vmatprep.subr.bf16.mxu0 0
    %205 = vmatpush1.bf16.msra.mxu0 %v183
    %206 = vmatprep.subr.bf16.mxu0 0
    %207 = vmatpush1.bf16.msra.mxu0 %v184
    %208 = vmatprep.subr.bf16.mxu0 0
    %209 = vmatpush1.bf16.msra.mxu0 %v185
    %210 = vmatprep.subr.bf16.mxu0 0
    %211 = vmatpush1.bf16.msra.mxu0 0
    %212 = vmatprep.subr.bf16.mxu0 0
    %213 = vmatpush1.bf16.msra.mxu0 0
    %214 = vmatprep.subr.bf16.mxu0 0
    %215 = vmatpush1.bf16.msra.mxu0 0
    %216 = vmatprep.subr.bf16.mxu0 0
    %217 = vmatpush1.bf16.msra.mxu0 0
    %218 = vmatprep.subr.bf16.mxu0 0
    %219 = vmatpush1.bf16.msra.mxu0 0
    %220 = vmatprep.subr.bf16.mxu0 0
    %221 = vmatpush1.bf16.msra.mxu0 0
    %222 = vmatprep.subr.bf16.mxu0 0
    %223 = vmatpush1.bf16.msra.mxu0 0
    %224 = vmatprep.subr.bf16.mxu0 0
    %225 = vmatpush1.bf16.msra.mxu0 0
    %226 = vmatprep.mubr.bf16.mxu0 0
    %227 = vmatmul.mubr.bf16.gmra.mrb[0].mxu0 %v129
    %v228 = vpop.f32.mrb[0].mxu0
    %v229 = vadd.f32 0.0, %v228
    %v230 = vpop.f32.mrb[0].mxu0
    %v231 = vpop.f32.mrb[0].mxu0
    %v232 = vpop.f32.mrb[0].mxu0
    %233 = vdwg.mxu0
    %v234 = vadd.f32 %v128, %v229
    %235 = vst [vmem:[#allocation2] sm:$0xff] %v234
    // Predicated region
    $region38: #{tpu_custom_call.1} parent=1 // pred_check
      %p236 = pneg %p61
    $region39: #{tpu_custom_call.1} parent=1 // pred_check_branch
      %238 = sbr.rel (%p236) target = $region41
    $region40: #{tpu_custom_call.1} parent=1 // pred_region
      %v239 = vld [vmem:[#allocation2] sm:$0xff]
      %v240 = vld [vmem:[%s4] sm:$0x1]
      %v242 = vlaneseq
      %v243 = vshrl.u32 %v242, 7
      %v244 = vsub.s32 0, %v243
      %v245 = vrot.slane %v240, %v244
      %v247 = vadd.f32 %v239, %v245
      %248 = vst [vmem:[#allocation9] sm:$0xff] %v247
    $region41: #{tpu_custom_call.1} parent=1 // pred_fallthru
      _
    // Predicated region
    $region42: #{tpu_custom_call.1} parent=1 // pred_check
      _
    $region43: #{tpu_custom_call.1} parent=1 // pred_check_branch
      %250 = sbr.rel (0) target = $region45
    $region44: #{tpu_custom_call.1} parent=1 // pred_region
      %s252 = ssub.s32 128, 128
      %253 = vsyncadd [#allocation5], %s252
      %s255 = sshll.u32 [#allocation9], 4
      %s256 = int_to_ptr.vmem [resolvable:$true] %s255
      %258 = dma.vmem_to_hbm [thread:$0]  %s256, 128, %s5, [#allocation5]
    $region45: #{tpu_custom_call.1} parent=1 // pred_fallthru
      _
    // Predicated region
    $region46: #{tpu_custom_call.1} parent=1 // pred_check
      _
    $region47: #{tpu_custom_call.1} parent=1 // pred_check_branch
      %260 = sbr.rel (0) target = $region49
    $region48: #{tpu_custom_call.1} parent=1 // pred_region
      %261 = dma.done [#allocation5], 128
    $region49: #{tpu_custom_call.1} parent=1 // pred_fallthru
      _
    %262 = vsyncpa [#allocation4], 1
    %263 = vsyncpa [#allocation7], 1
    %264 = vsyncpa [#allocation5], 1

// kernel: tpu_custom_call.1
$region0: #{tpu_custom_call.1}
  #allocation0 [shape = 'u32[]', space=smem, size = 0x4, offset = 0x4, fixed_abs, tag = 'smem constant byte address 0x4 - core index']
  #allocation1 [shape = 'u32[144,128]{1,0:T(1,128)}', space=vmem, size = 0x12000, scoped, tag = 'internal scratch']
  #allocation2 [shape = 'f32[8,128]{1,0:T(8,128)}', space=vmem, size = 0x1000, scoped, tag = 'scratch operand']
  %s0 = inlined_call_operand.hbm [shape: f32[8,16], index: 0, kind: input, shape index: {}]
  %s1 = inlined_call_operand.hbm [shape: bf16[16,128], index: 1, kind: input, shape index: {}]
  %s2 = inlined_call_operand.vmem [shape: f32[1,128], index: 2, kind: input, shape index: {}]
  %s3 = inlined_call_operand.hbm [shape: bf16[128,128], index: 3, kind: input, shape index: {}]
  %s4 = inlined_call_operand.vmem [shape: f32[1,128], index: 4, kind: input, shape index: {}]
  %s5 = inlined_call_operand.hbm [shape: f32[8,128], index: 5, kind: output, shape index: {}]
  %s6 = sld [smem:[#allocation0]]
  $region50: #{tpu_custom_call.1} parent=0
    _
  %s8 = ssub.s32 1, %s6
  %s9 = scalar_select 0, %s8, %s6
  $region1: #{tpu_custom_call.1} parent=0
    #allocation3 [shape = 'u8[4096]{0}', space=vmem, size = 0x1000, scoped, tag = 'input window, operand 0, single buffered']
    #allocation4 [shape = 's32[1]{0}', space=sflag, size = 0x4, scoped, tag = 'scoped memory for tpu_custom_call.1']
    #allocation5 [shape = 's32[1]{0}', space=sflag, size = 0x4, scoped, tag = 'scoped memory for tpu_custom_call.1']
    #allocation6 [shape = 'u8[4096]{0}', space=vmem, size = 0x1000, scoped, tag = 'input window, operand 1, single buffered']
    #allocation7 [shape = 's32[1]{0}', space=sflag, size = 0x4, scoped, tag = 'scoped memory for tpu_custom_call.1']
    #allocation8 [shape = 'u8[32768]{0}', space=vmem, size = 0x8000, scoped, tag = 'input window, operand 3, single buffered']
    #allocation9 [shape = 'u8[4096]{0}', space=vmem, size = 0x1000, scoped, tag = 'output window, operand 0, single buffered']
    %10 = vsyncpa [#allocation4], 0
    %11 = vsyncpa [#allocation7], 0
    %12 = vsyncpa [#allocation5], 0
    // Predicated region
    $region2: #{tpu_custom_call.1} parent=1 // pred_check
      _
    $region3: #{tpu_custom_call.1} parent=1 // pred_check_branch
      %14 = sbr.rel (0) target = $region5
    $region4: #{tpu_custom_call.1} parent=1 // pred_region
      %s16 = ssub.s32 128, 128
      %17 = vsyncadd [#allocation4], %s16
      %s19 = sshll.u32 [#allocation3], 4
      %s20 = int_to_ptr.vmem [resolvable:$true] %s19
      %22 = dma.hbm_to_vmem [thread:$0]  %s0, 128, %s20, [#allocation4]
    $region5: #{tpu_custom_call.1} parent=1 // pred_fallthru
      _
    // Predicated region
    $region6: #{tpu_custom_call.1} parent=1 // pred_check
      _
    $region7: #{tpu_custom_call.1} parent=1 // pred_check_branch
      %24 = sbr.rel (0) target = $region9
    $region8: #{tpu_custom_call.1} parent=1 // pred_region
      %s26 = ssub.s32 128, 128
      %27 = vsyncadd [#allocation7], %s26
      %s28 = sshll.u32 [#allocation6], 4
      %s29 = int_to_ptr.vmem [resolvable:$true] %s28
      %34 = dma.hbm_to_vmem [thread:$0]  %s1, 128, %s29, [#allocation7], 64, 64, 4
    $region9: #{tpu_custom_call.1} parent=1 // pred_fallthru
      _
    // Predicated region
    $region10: #{tpu_custom_call.1} parent=1 // pred_check
      _
    $region11: #{tpu_custom_call.1} parent=1 // pred_check_branch
      %36 = sbr.rel (0) target = $region13
    $region12: #{tpu_custom_call.1} parent=1 // pred_region
      _
    $region13: #{tpu_custom_call.1} parent=1 // pred_fallthru
      _
    // Predicated region
    $region14: #{tpu_custom_call.1} parent=1 // pred_check
      _
    $region15: #{tpu_custom_call.1} parent=1 // pred_check_branch
      %38 = sbr.rel (0) target = $region17
    $region16: #{tpu_custom_call.1} parent=1 // pred_region
      %s40 = ssub.s32 1024, 1024
      %41 = vsyncadd [#allocation7], %s40
      %s42 = sshll.u32 [#allocation8], 4
      %s43 = int_to_ptr.vmem [resolvable:$true] %s42
      %48 = dma.hbm_to_vmem [thread:$0]  %s3, 1024, %s43, [#allocation7], 64, 64, 4
    $region17: #{tpu_custom_call.1} parent=1 // pred_fallthru
      _
    // Predicated region
    $region18: #{tpu_custom_call.1} parent=1 // pred_check
      _
    $region19: #{tpu_custom_call.1} parent=1 // pred_check_branch
      %50 = sbr.rel (0) target = $region21
    $region20: #{tpu_custom_call.1} parent=1 // pred_region
      _
    $region21: #{tpu_custom_call.1} parent=1 // pred_fallthru
      _
    // Predicated region
    $region22: #{tpu_custom_call.1} parent=1 // pred_check
      _
    $region23: #{tpu_custom_call.1} parent=1 // pred_check_branch
      %52 = sbr.rel (0) target = $region25
    $region24: #{tpu_custom_call.1} parent=1 // pred_region
      %53 = dma.done [#allocation4], 128
    $region25: #{tpu_custom_call.1} parent=1 // pred_fallthru
      _
    // Predicated region
    $region26: #{tpu_custom_call.1} parent=1 // pred_check
      _
    $region27: #{tpu_custom_call.1} parent=1 // pred_check_branch
      %55 = sbr.rel (0) target = $region29
    $region28: #{tpu_custom_call.1} parent=1 // pred_region
      %56 = dma.done [#allocation7], 128
    $region29: #{tpu_custom_call.1} parent=1 // pred_fallthru
      _
    // Predicated region
    $region30: #{tpu_custom_call.1} parent=1 // pred_check
      _
    $region31: #{tpu_custom_call.1} parent=1 // pred_check_branch
      %58 = sbr.rel (0) target = $region33
    $region32: #{tpu_custom_call.1} parent=1 // pred_region
      %59 = dma.done [#allocation7], 1024
    $region33: #{tpu_custom_call.1} parent=1 // pred_fallthru
      _
    %p61 = scmp.eq.s32.totalorder 0, 0
    // Predicated region
    $region34: #{tpu_custom_call.1} parent=1 // pred_check
      %p62 = pneg %p61
    $region35: #{tpu_custom_call.1} parent=1 // pred_check_branch
      %64 = sbr.rel (%p62) target = $region37
    $region36: #{tpu_custom_call.1} parent=1 // pred_region
      %65 = vst [vmem:[#allocation2] sm:$0xff] 0.0
    $region37: #{tpu_custom_call.1} parent=1 // pred_fallthru
      _
    %v66 = vld [vmem:[#allocation3] sm:$0xff]
    %v67 = vpack.c.bf16 %v66, %v66
    %v68 = vld [vmem:[#allocation6] sm:$0xf]
    %v69 = vld [vmem:[#allocation6 + $0x4] sm:$0xf]
    %v70 = vld [vmem:[%s2] sm:$0x1]
    %v72 = vlaneseq
    %v73 = vshrl.u32 %v72, 7
    %v74 = vsub.s32 0, %v73
    %v75 = vrot.slane %v70, %v74
    %v79 = vunpack.c.l.b16 %v68
    %v80 = vunpack.c.l.b16 %v69
    %v81 = vpack.c.b16 %v80, %v79
    %vm83 = vcmask 130048
    %v85 = vsel %vm83, %v67, 0
    %87 = vmatprep.subr.bf16.mxu0 0
    %88 = vmatpush1.bf16.msra.mxu0 %v81
    %89 = vmatprep.subr.bf16.mxu0 0
    %90 = vmatpush1.bf16.msra.mxu0 0
    %91 = vmatprep.subr.bf16.mxu0 0
    %92 = vmatpush1.bf16.msra.mxu0 0
    %93 = vmatprep.subr.bf16.mxu0 0
    %94 = vmatpush1.bf16.msra.mxu0 0
    %95 = vmatprep.subr.bf16.mxu0 0
    %96 = vmatpush1.bf16.msra.mxu0 0
    %97 = vmatprep.subr.bf16.mxu0 0
    %98 = vmatpush1.bf16.msra.mxu0 0
    %99 = vmatprep.subr.bf16.mxu0 0
    %100 = vmatpush1.bf16.msra.mxu0 0
    %101 = vmatprep.subr.bf16.mxu0 0
    %102 = vmatpush1.bf16.msra.mxu0 0
    %103 = vmatprep.subr.bf16.mxu0 0
    %104 = vmatpush1.bf16.msra.mxu0 0
    %105 = vmatprep.subr.bf16.mxu0 0
    %106 = vmatpush1.bf16.msra.mxu0 0
    %107 = vmatprep.subr.bf16.mxu0 0
    %108 = vmatpush1.bf16.msra.mxu0 0
    %109 = vmatprep.subr.bf16.mxu0 0
    %110 = vmatpush1.bf16.msra.mxu0 0
    %111 = vmatprep.subr.bf16.mxu0 0
    %112 = vmatpush1.bf16.msra.mxu0 0
    %113 = vmatprep.subr.bf16.mxu0 0
    %114 = vmatpush1.bf16.msra.mxu0 0
    %115 = vmatprep.subr.bf16.mxu0 0
    %116 = vmatpush1.bf16.msra.mxu0 0
    %117 = vmatprep.subr.bf16.mxu0 0
    %118 = vmatpush1.bf16.msra.mxu0 0
    %119 = vmatprep.mubr.bf16.mxu0 0
    %120 = vmatmul.mubr.bf16.gmra.mrb[0].mxu0 %v85
    %v121 = vpop.f32.mrb[0].mxu0
    %v122 = vadd.f32 %v75, %v121
    %v123 = vpop.f32.mrb[0].mxu0
    %v124 = vpop.f32.mrb[0].mxu0
    %v125 = vpop.f32.mrb[0].mxu0
    %126 = vdwg.mxu0
    %v127 = vmax.f32 %v122, 0.0
    %v128 = vld [vmem:[#allocation2] sm:$0xff]
    %v129 = vpack.c.bf16 %v127, %v127
    %v130 = vld [vmem:[#allocation8] sm:$0xf]
    %v131 = vld [vmem:[#allocation8 + $0x4] sm:$0xf]
    %v132 = vld [vmem:[#allocation8 + $0x8] sm:$0xf]
    %v133 = vld [vmem:[#allocation8 + $0xc] sm:$0xf]
    %v134 = vld [vmem:[#allocation8 + $0x10] sm:$0xf]
    %v135 = vld [vmem:[#allocation8 + $0x14] sm:$0xf]
    %v136 = vld [vmem:[#allocation8 + $0x18] sm:$0xf]
    %v137 = vld [vmem:[#allocation8 + $0x1c] sm:$0xf]
    %v138 = vld [vmem:[#allocation8 + $0x20] sm:$0xf]
    %v139 = vld [vmem:[#allocation8 + $0x24] sm:$0xf]
    %v140 = vld [vmem:[#allocation8 + $0x28] sm:$0xf]
    %v141 = vld [vmem:[#allocation8 + $0x2c] sm:$0xf]
    %v142 = vld [vmem:[#allocation8 + $0x30] sm:$0xf]
    %v143 = vld [vmem:[#allocation8 + $0x34] sm:$0xf]
    %v144 = vld [vmem:[#allocation8 + $0x38] sm:$0xf]
    %v145 = vld [vmem:[#allocation8 + $0x3c] sm:$0xf]
    %v162 = vunpack.c.l.b16 %v130
    %v163 = vunpack.c.l.b16 %v131
    %v164 = vunpack.c.l.b16 %v132
    %v165 = vunpack.c.l.b16 %v133
    %v166 = vunpack.c.l.b16 %v134
    %v167 = vunpack.c.l.b16 %v135
    %v168 = vunpack.c.l.b16 %v136
    %v169 = vunpack.c.l.b16 %v137
    %v170 = vunpack.c.l.b16 %v138
    %v171 = vunpack.c.l.b16 %v139
    %v172 = vunpack.c.l.b16 %v140
    %v173 = vunpack.c.l.b16 %v141
    %v174 = vunpack.c.l.b16 %v142
    %v175 = vunpack.c.l.b16 %v143
    %v176 = vunpack.c.l.b16 %v144
    %v177 = vunpack.c.l.b16 %v145
    %v178 = vpack.c.b16 %v163, %v162
    %v179 = vpack.c.b16 %v165, %v164
    %v180 = vpack.c.b16 %v167, %v166
    %v181 = vpack.c.b16 %v169, %v168
    %v182 = vpack.c.b16 %v171, %v170
    %v183 = vpack.c.b16 %v173, %v172
    %v184 = vpack.c.b16 %v175, %v174
    %v185 = vpack.c.b16 %v177, %v176
    %194 = vmatprep.subr.bf16.mxu0 0
    %195 = vmatpush1.bf16.msra.mxu0 %v178
    %196 = vmatprep.subr.bf16.mxu0 0
    %197 = vmatpush1.bf16.msra.mxu0 %v179
    %198 = vmatprep.subr.bf16.mxu0 0
    %199 = vmatpush1.bf16.msra.mxu0 %v180
    %200 = vmatprep.subr.bf16.mxu0 0
    %201 = vmatpush1.bf16.msra.mxu0 %v181
    %202 = vmatprep.subr.bf16.mxu0 0
    %203 = vmatpush1.bf16.msra.mxu0 %v182
    %204 = vmatprep.subr.bf16.mxu0 0
    %205 = vmatpush1.bf16.msra.mxu0 %v183
    %206 = vmatprep.subr.bf16.mxu0 0
    %207 = vmatpush1.bf16.msra.mxu0 %v184
    %208 = vmatprep.subr.bf16.mxu0 0
    %209 = vmatpush1.bf16.msra.mxu0 %v185
    %210 = vmatprep.subr.bf16.mxu0 0
    %211 = vmatpush1.bf16.msra.mxu0 0
    %212 = vmatprep.subr.bf16.mxu0 0
    %213 = vmatpush1.bf16.msra.mxu0 0
    %214 = vmatprep.subr.bf16.mxu0 0
    %215 = vmatpush1.bf16.msra.mxu0 0
    %216 = vmatprep.subr.bf16.mxu0 0
    %217 = vmatpush1.bf16.msra.mxu0 0
    %218 = vmatprep.subr.bf16.mxu0 0
    %219 = vmatpush1.bf16.msra.mxu0 0
    %220 = vmatprep.subr.bf16.mxu0 0
    %221 = vmatpush1.bf16.msra.mxu0 0
    %222 = vmatprep.subr.bf16.mxu0 0
    %223 = vmatpush1.bf16.msra.mxu0 0
    %224 = vmatprep.subr.bf16.mxu0 0
    %225 = vmatpush1.bf16.msra.mxu0 0
    %226 = vmatprep.mubr.bf16.mxu0 0
    %227 = vmatmul.mubr.bf16.gmra.mrb[0].mxu0 %v129
    %v228 = vpop.f32.mrb[0].mxu0
    %v229 = vadd.f32 0.0, %v228
    %v230 = vpop.f32.mrb[0].mxu0
    %v231 = vpop.f32.mrb[0].mxu0
    %v232 = vpop.f32.mrb[0].mxu0
    %233 = vdwg.mxu0
    %v234 = vadd.f32 %v128, %v229
    %235 = vst [vmem:[#allocation2] sm:$0xff] %v234
    // Predicated region
    $region38: #{tpu_custom_call.1} parent=1 // pred_check
      %p236 = pneg %p61
    $region39: #{tpu_custom_call.1} parent=1 // pred_check_branch
      %238 = sbr.rel (%p236) target = $region41
    $region40: #{tpu_custom_call.1} parent=1 // pred_region
      %v239 = vld [vmem:[#allocation2] sm:$0xff]
      %v240 = vld [vmem:[%s4] sm:$0x1]
      %v242 = vlaneseq
      %v243 = vshrl.u32 %v242, 7
      %v244 = vsub.s32 0, %v243
      %v245 = vrot.slane %v240, %v244
      %v247 = vadd.f32 %v239, %v245
      %248 = vst [vmem:[#allocation9] sm:$0xff] %v247
    $region41: #{tpu_custom_call.1} parent=1 // pred_fallthru
      _
    // Predicated region
    $region42: #{tpu_custom_call.1} parent=1 // pred_check
      _
    $region43: #{tpu_custom_call.1} parent=1 // pred_check_branch
      %250 = sbr.rel (0) target = $region45
    $region44: #{tpu_custom_call.1} parent=1 // pred_region
      %s252 = ssub.s32 128, 128
      %253 = vsyncadd [#allocation5], %s252
      %s255 = sshll.u32 [#allocation9], 4
      %s256 = int_to_ptr.vmem [resolvable:$true] %s255
      %258 = dma.vmem_to_hbm [thread:$0]  %s256, 128, %s5, [#allocation5]
    $region45: #{tpu_custom_call.1} parent=1 // pred_fallthru
      _
    // Predicated region
    $region46: #{tpu_custom_call.1} parent=1 // pred_check
      _
    $region47: #{tpu_custom_call.1} parent=1 // pred_check_branch
      %260 = sbr.rel (0) target = $region49
    $region48: #{tpu_custom_call.1} parent=1 // pred_region
      %261 = dma.done [#allocation5], 128
    $region49: #{tpu_custom_call.1} parent=1 // pred_fallthru
      _
    %262 = vsyncpa [#allocation4], 1
    %263 = vsyncpa [#allocation7], 1
    %264 = vsyncpa [#allocation5], 1

</llo_original>
